<compile_context>
chip_gen: v6e
topology: v6e:2x2x1
jax: 0.10.0
libtpu: 0.0.40
codegen_flags: <defaults>
</compile_context>

<pallas_src>
import math
import functools

import jax
import jax.numpy as jnp
import numpy as np
from jax.experimental import pallas as pl
from jax.experimental.pallas import tpu as pltpu


# ----------------------------------------------------------------------------
# PyTorch SPPLayer per-level pooling geometry
# ----------------------------------------------------------------------------
def _spp_level_params(h, w, level):
    """Replicates the PyTorch SPPLayer kernel/stride/padding math per level."""
    kh = math.ceil(h / level)
    kw = math.ceil(w / level)
    sh, sw = kh, kw
    ph = math.floor((kh * level - h + 1) / 2)
    pw = math.floor((kw * level - w + 1) / 2)
    out_h = (h + 2 * ph - kh) // sh + 1
    out_w = (w + 2 * pw - kw) // sw + 1
    assert out_h >= 1 and out_w >= 1
    return kh, kw, sh, sw, ph, pw, out_h, out_w


def _level_layout(h, w, num_levels):
    """Per-level (out_h, out_w) and offsets into the packed position axis."""
    sizes, offsets, total = [], [], 0
    for i in range(num_levels):
        level = i + 1
        *_, out_h, out_w = _spp_level_params(h, w, level)
        sizes.append((out_h, out_w))
        offsets.append(total)
        total += out_h * out_w
    return sizes, offsets, total


# ----------------------------------------------------------------------------
# Kernel
# ----------------------------------------------------------------------------
def _spp_kernel(x_ref, o_ref, *scratch, h, w, num_levels, pool_type,
                compute_dtype):
    # x_ref block: (TB, TC, H, W) NCHW.  o_ref block: (TB, TC, P_total).
    is_max = pool_type == 'max_pool'

    if scratch:
        # avg_pool on a non-f32 input: cast the block ONCE into an f32 VMEM
        # scratch (strip-mined to bound vreg pressure); every level then reads
        # already-converted data instead of re-casting per level.
        xf = scratch[0]
        for r0 in range(0, h, 8):
            r1 = min(r0 + 8, h)
            xf[:, :, r0:r1, :] = x_ref[:, :, r0:r1, :].astype(compute_dtype)
        src = xf
    else:
        # max_pool: reduce in native dtype (exact, keeps bf16 packed);
        # avg_pool with f32 input: already in the accumulation dtype.
        src = x_ref

    p_off = 0
    for i in range(num_levels):
        level = i + 1
        kh, kw, sh, sw, ph, pw, out_h, out_w = _spp_level_params(h, w, level)
        inv_area = 1.0 / float(kh * kw)
        for oy in range(out_h):
            ys = oy * sh - ph
            ye = ys + kh
            ys_c, ye_c = max(ys, 0), min(ye, h)
            assert ys_c < ye_c, "pooling window fully inside padding (rows)"
            # Reduce the H direction for this output row in <=8-row strips
            # (bounded live vregs); the resulting (TB, TC, W) band is shared
            # by every window of the row.
            band = None
            for r0 in range(ys_c, ye_c, 8):
                r1 = min(r0 + 8, ye_c)
                strip = src[:, :, r0:r1, :]                  # (TB, TC, <=8, W)
                red = (jnp.max(strip, axis=2) if is_max
                       else jnp.sum(strip, axis=2))          # (TB, TC, W)
                if band is None:
                    band = red
                else:
                    band = jnp.maximum(band, red) if is_max else band + red

            cols = []
            for ox in range(out_w):
                xs = ox * sw - pw
                xe = xs + kw
                xs_c, xe_c = max(xs, 0), min(xe, w)
                assert xs_c < xe_c, "pooling window fully inside padding (cols)"
                win = band[:, :, xs_c:xe_c]                  # (TB, TC, kw_v)
                if is_max:
                    # -inf padding of max_pool2d never wins -> clipping exact.
                    cols.append(jnp.max(win, axis=-1, keepdims=True))
                else:
                    # avg_pool2d count_include_pad=True: zero padding adds 0,
                    # divisor is the full kernel area.
                    cols.append(jnp.sum(win, axis=-1, keepdims=True) * inv_area)

            # One slab store per output row instead of out_w masked stores.
            row = cols[0] if out_w == 1 else jnp.concatenate(cols, axis=-1)
            row_off = p_off + oy * out_w
            o_ref[:, :, row_off:row_off + out_w] = row.astype(o_ref.dtype)
        p_off += out_h * out_w


# ----------------------------------------------------------------------------
# Tiling heuristics
# ----------------------------------------------------------------------------
def _cdiv(a, b):
    return -(-a // b)


def _round_up(a, m):
    return ((a + m - 1) // m) * m


def _shrink(tb, tc, c):
    """Halve the batch tile first, then the channel tile.  tc stays legal
    (== C or a multiple of 8) so the output block's sublane dim is valid."""
    if tb > 1:
        return (tb + 1) // 2, tc
    if c >= 16 and tc > 8:
        new_tc = max(8, ((tc // 2) // 8) * 8)
        if new_tc < tc:
            return tb, new_tc
    return tb, tc


def _pick_tiles(n, c, h, w, in_itemsize, out_itemsize, compute_itemsize,
                need_f32_scratch, p_total):
    """Choose (batch_tile, channel_tile, vmem_limit_bytes)."""
    try:
        vmem_cap = int(pltpu.get_tpu_info().vmem_capacity_bytes)
    except Exception:
        vmem_cap = 64 * 1024 * 1024                 # v7x-safe fallback
    vmem_limit = max(32 * 1024 * 1024, (vmem_cap * 3) // 4)

    sub_in = 8 * max(1, 4 // max(in_itemsize, 1))   # sublane packing of input
    h_in = _round_up(h, sub_in)
    h_f32 = _round_up(h, 8)
    w_pad = _round_up(w, 128)
    p_pad = _round_up(p_total, 128)

    def in_block_bytes(tb, tc):
        return tb * tc * h_in * w_pad * in_itemsize

    def fits(tb, tc):
        blk = in_block_bytes(tb, tc)
        scratch = tb * tc * h_f32 * w_pad * 4 if need_f32_scratch else 0
        out_blk = tb * _round_up(tc, 8) * p_pad * out_itemsize
        total = 2 * blk + scratch + 2 * out_blk      # double-buffered in/out
        # ~(8-row strip + band accumulator + slack) live in vregs at once.
        band_live = 10 * _round_up(tb * tc, 8) * w_pad * compute_itemsize
        return total <= (vmem_limit * 4) // 5 and band_live <= 128 * 1024

    tb, tc = n, c
    while not fits(tb, tc):
        ntb, ntc = _shrink(tb, tc, c)
        if (ntb, ntc) == (tb, tc):
            break   # TODO(synk): add spatial (H) tiling for huge single images.
        tb, tc = ntb, ntc

    # Aim for >=4 grid steps (>=2 per v7x TensorCore -> DMA/compute overlap),
    # but only while each step still moves a meaningful amount of data.
    while (_cdiv(n, tb) * _cdiv(c, tc) < 4
           and in_block_bytes(tb, tc) >= 2 * 1024 * 1024):
        ntb, ntc = _shrink(tb, tc, c)
        if (ntb, ntc) == (tb, tc):
            break
        tb, tc = ntb, ntc

    return tb, tc, int(vmem_limit)


# ----------------------------------------------------------------------------
# Wrapper (== SPPLayer.forward)
# ----------------------------------------------------------------------------
def spp_layer(x, num_levels, pool_type='max_pool'):
    n, c, h, w = x.shape
    sizes, offsets, p_total = _level_layout(h, w, num_levels)

    is_max = pool_type == 'max_pool'
    compute_dtype = x.dtype if is_max else jnp.float32
    need_f32_scratch = (not is_max) and (x.dtype != jnp.float32)

    tb, tc, vmem_limit = _pick_tiles(
        n, c, h, w,
        in_itemsize=x.dtype.itemsize,
        out_itemsize=x.dtype.itemsize,
        compute_itemsize=jnp.dtype(compute_dtype).itemsize,
        need_f32_scratch=need_f32_scratch,
        p_total=p_total)

    grid = (_cdiv(n, tb), _cdiv(c, tc))

    scratch_shapes = []
    if need_f32_scratch:
        scratch_shapes.append(pltpu.VMEM((tb, tc, h, w), jnp.float32))

    kernel = functools.partial(
        _spp_kernel, h=h, w=w, num_levels=num_levels, pool_type=pool_type,
        compute_dtype=compute_dtype)

    in_bytes = n * c * h * w * x.dtype.itemsize
    out_bytes = n * c * p_total * x.dtype.itemsize
    cost = pl.CostEstimate(flops=num_levels * n * c * h * w,
                           transcendentals=0,
                           bytes_accessed=in_bytes + out_bytes)

    pooled = pl.pallas_call(
        kernel,
        out_shape=jax.ShapeDtypeStruct((n, c, p_total), x.dtype),
        grid=grid,
        in_specs=[pl.BlockSpec((tb, tc, h, w), lambda b, ch: (b, ch, 0, 0))],
        out_specs=pl.BlockSpec((tb, tc, p_total), lambda b, ch: (b, ch, 0)),
        scratch_shapes=tuple(scratch_shapes),
        compiler_params=pltpu.CompilerParams(
            dimension_semantics=("parallel", "parallel"),
            vmem_limit_bytes=vmem_limit),
        cost_estimate=cost,
    )(x)

    # torch semantics: per level, (N, C, oh, ow).view(N, -1) then cat over
    # levels.  With the (N, C, P_total) output layout each level's flatten is a
    # free row-major reshape; only a tiny concat of the pooled result remains.
    pieces = []
    for (out_h, out_w), off in zip(sizes, offsets):
        p = out_h * out_w
        pieces.append(pooled[:, :, off:off + p].reshape(n, c * p))
    return jnp.concatenate(pieces, axis=1)


# ----------------------------------------------------------------------------
# Pure-JAX reference (mirrors F.max_pool2d / F.avg_pool2d semantics)
# ----------------------------------------------------------------------------
def _spp_reference(x, num_levels, pool_type='max_pool'):
    n, c, h, w = x.shape
    pieces = []
    for i in range(num_levels):
        level = i + 1
        kh, kw, sh, sw, ph, pw, out_h, out_w = _spp_level_params(h, w, level)
        rows = []
        for oy in range(out_h):
            ys, ye = oy * sh - ph, oy * sh - ph + kh
            ys_c, ye_c = max(ys, 0), min(ye, h)
            cols = []
            for ox in range(out_w):
                xs, xe = ox * sw - pw, ox * sw - pw + kw
                xs_c, xe_c = max(xs, 0), min(xe, w)
                win = x[:, :, ys_c:ye_c, xs_c:xe_c]
                if pool_type == 'max_pool':
                    cols.append(jnp.max(win, axis=(2, 3)))
                else:
                    cols.append(jnp.sum(win, axis=(2, 3)) / float(kh * kw))
            rows.append(jnp.stack(cols, axis=-1))
        lvl = jnp.stack(rows, axis=-2)  # (N, C, out_h, out_w)
        pieces.append(lvl.reshape(n, -1))
    return jnp.concatenate(pieces, axis=1)


if __name__ == "__main__":
    key = jax.random.PRNGKey(0)
    N, C, H, W = 2, 4, 16, 16
    NUM_LEVELS = 3
    x = jax.random.normal(key, (N, C, H, W), dtype=jnp.float32)

    expected_cols = C * sum((i + 1) ** 2 for i in range(NUM_LEVELS))

    out_max = jax.block_until_ready(spp_layer(x, NUM_LEVELS, 'max_pool'))
    ref_max = _spp_reference(x, NUM_LEVELS, 'max_pool')
    np.testing.assert_allclose(np.asarray(out_max), np.asarray(ref_max),
                               rtol=1e-6, atol=1e-6)
    assert out_max.shape == (N, expected_cols)

    out_avg = jax.block_until_ready(spp_layer(x, NUM_LEVELS, 'avg_pool'))
    ref_avg = _spp_reference(x, NUM_LEVELS, 'avg_pool')
    np.testing.assert_allclose(np.asarray(out_avg), np.asarray(ref_avg),
                               rtol=1e-5, atol=1e-6)
    assert out_avg.shape == (N, expected_cols)

    print("KERNEL_OK")
</pallas_src>

<mosaic_0001>
module attributes {stable_mosaic.version = 11 : i64} {
  func.func @_spp_kernel(%arg0: i32, %arg1: i32, %arg2: memref<2x4x16x16xf32, #tpu.memory_space<vmem>>, %arg3: memref<2x4x14xf32, #tpu.memory_space<vmem>>) attributes {dimension_semantics = [#tpu.dimension_semantics<parallel>, #tpu.dimension_semantics<parallel>], iteration_bounds = array<i64: 1, 1>, scalar_prefetch = 0 : i64, scratch_operands = 0 : i64, tpu.core_type = #tpu.core_type<tc>, window_params = [{transform_indices = @transform_0, window_bounds = array<i64: 2, 4, 16, 16>}, {transform_indices = @transform_1, window_bounds = array<i64: 2, 4, 14>}]} {
    %c0 = arith.constant 0 : index
    %c0_0 = arith.constant 0 : index
    %c0_1 = arith.constant 0 : index
    %c0_2 = arith.constant 0 : index
    %0 = vector.load %arg2[%c0, %c0_0, %c0_1, %c0_2] : memref<2x4x16x16xf32, #tpu.memory_space<vmem>>, vector<2x4x8x16xf32>
    %cst = arith.constant dense<0xFF800000> : vector<2x4x16xf32>
    %1 = vector.multi_reduction <maximumf>, %0, %cst [2] : vector<2x4x8x16xf32> to vector<2x4x16xf32>
    %c0_3 = arith.constant 0 : index
    %c0_4 = arith.constant 0 : index
    %c8 = arith.constant 8 : index
    %c0_5 = arith.constant 0 : index
    %2 = vector.load %arg2[%c0_3, %c0_4, %c8, %c0_5] : memref<2x4x16x16xf32, #tpu.memory_space<vmem>>, vector<2x4x8x16xf32>
    %cst_6 = arith.constant dense<0xFF800000> : vector<2x4x16xf32>
    %3 = vector.multi_reduction <maximumf>, %2, %cst_6 [2] : vector<2x4x8x16xf32> to vector<2x4x16xf32>
    %4 = arith.maximumf %1, %3 : vector<2x4x16xf32>
    %cst_7 = arith.constant dense<0xFF800000> : vector<2x4xf32>
    %5 = vector.multi_reduction <maximumf>, %4, %cst_7 [2] : vector<2x4x16xf32> to vector<2x4xf32>
    %6 = vector.shape_cast %5 : vector<2x4xf32> to vector<2x4x1xf32>
    %c0_8 = arith.constant 0 : index
    %c0_9 = arith.constant 0 : index
    %c0_10 = arith.constant 0 : index
    %7 = vector.load %arg3[%c0_8, %c0_9, %c0_10] : memref<2x4x14xf32, #tpu.memory_space<vmem>>, vector<2x4x1xf32>
    tpu.vector_store %arg3[%c0_8, %c0_9, %c0_10], %6 {strides = array<i32>} : memref<2x4x14xf32, #tpu.memory_space<vmem>>, vector<2x4x1xf32>,
    %c0_11 = arith.constant 0 : index
    %c0_12 = arith.constant 0 : index
    %c0_13 = arith.constant 0 : index
    %c0_14 = arith.constant 0 : index
    %8 = vector.load %arg2[%c0_11, %c0_12, %c0_13, %c0_14] : memref<2x4x16x16xf32, #tpu.memory_space<vmem>>, vector<2x4x8x16xf32>
    %cst_15 = arith.constant dense<0xFF800000> : vector<2x4x16xf32>
    %9 = vector.multi_reduction <maximumf>, %8, %cst_15 [2] : vector<2x4x8x16xf32> to vector<2x4x16xf32>
    %10 = vector.extract_strided_slice %9 {offsets = [0, 0, 0], sizes = [2, 4, 8], strides = [1, 1, 1]} : vector<2x4x16xf32> to vector<2x4x8xf32>
    %cst_16 = arith.constant dense<0xFF800000> : vector<2x4xf32>
    %11 = vector.multi_reduction <maximumf>, %10, %cst_16 [2] : vector<2x4x8xf32> to vector<2x4xf32>
    %12 = vector.shape_cast %11 : vector<2x4xf32> to vector<2x4x1xf32>
    %13 = vector.extract_strided_slice %9 {offsets = [0, 0, 8], sizes = [2, 4, 8], strides = [1, 1, 1]} : vector<2x4x16xf32> to vector<2x4x8xf32>
    %cst_17 = arith.constant dense<0xFF800000> : vector<2x4xf32>
    %14 = vector.multi_reduction <maximumf>, %13, %cst_17 [2] : vector<2x4x8xf32> to vector<2x4xf32>
    %15 = vector.shape_cast %14 : vector<2x4xf32> to vector<2x4x1xf32>
    %16 = tpu.concatenate %12, %15 in 2 : vector<2x4x1xf32>, vector<2x4x1xf32> -> vector<2x4x2xf32>
    %c0_18 = arith.constant 0 : index
    %c0_19 = arith.constant 0 : index
    %c1 = arith.constant 1 : index
    %17 = vector.load %arg3[%c0_18, %c0_19, %c1] : memref<2x4x14xf32, #tpu.memory_space<vmem>>, vector<2x4x2xf32>
    tpu.vector_store %arg3[%c0_18, %c0_19, %c1], %16 {strides = array<i32>} : memref<2x4x14xf32, #tpu.memory_space<vmem>>, vector<2x4x2xf32>,
    %c0_20 = arith.constant 0 : index
    %c0_21 = arith.constant 0 : index
    %c8_22 = arith.constant 8 : index
    %c0_23 = arith.constant 0 : index
    %18 = vector.load %arg2[%c0_20, %c0_21, %c8_22, %c0_23] : memref<2x4x16x16xf32, #tpu.memory_space<vmem>>, vector<2x4x8x16xf32>
    %cst_24 = arith.constant dense<0xFF800000> : vector<2x4x16xf32>
    %19 = vector.multi_reduction <maximumf>, %18, %cst_24 [2] : vector<2x4x8x16xf32> to vector<2x4x16xf32>
    %20 = vector.extract_strided_slice %19 {offsets = [0, 0, 0], sizes = [2, 4, 8], strides = [1, 1, 1]} : vector<2x4x16xf32> to vector<2x4x8xf32>
    %cst_25 = arith.constant dense<0xFF800000> : vector<2x4xf32>
    %21 = vector.multi_reduction <maximumf>, %20, %cst_25 [2] : vector<2x4x8xf32> to vector<2x4xf32>
    %22 = vector.shape_cast %21 : vector<2x4xf32> to vector<2x4x1xf32>
    %23 = vector.extract_strided_slice %19 {offsets = [0, 0, 8], sizes = [2, 4, 8], strides = [1, 1, 1]} : vector<2x4x16xf32> to vector<2x4x8xf32>
    %cst_26 = arith.constant dense<0xFF800000> : vector<2x4xf32>
    %24 = vector.multi_reduction <maximumf>, %23, %cst_26 [2] : vector<2x4x8xf32> to vector<2x4xf32>
    %25 = vector.shape_cast %24 : vector<2x4xf32> to vector<2x4x1xf32>
    %26 = tpu.concatenate %22, %25 in 2 : vector<2x4x1xf32>, vector<2x4x1xf32> -> vector<2x4x2xf32>
    %c0_27 = arith.constant 0 : index
    %c0_28 = arith.constant 0 : index
    %c3 = arith.constant 3 : index
    %27 = vector.load %arg3[%c0_27, %c0_28, %c3] : memref<2x4x14xf32, #tpu.memory_space<vmem>>, vector<2x4x2xf32>
    tpu.vector_store %arg3[%c0_27, %c0_28, %c3], %26 {strides = array<i32>} : memref<2x4x14xf32, #tpu.memory_space<vmem>>, vector<2x4x2xf32>,
    %c0_29 = arith.constant 0 : index
    %c0_30 = arith.constant 0 : index
    %c0_31 = arith.constant 0 : index
    %c0_32 = arith.constant 0 : index
    %28 = vector.load %arg2[%c0_29, %c0_30, %c0_31, %c0_32] : memref<2x4x16x16xf32, #tpu.memory_space<vmem>>, vector<2x4x5x16xf32>
    %cst_33 = arith.constant dense<0xFF800000> : vector<2x4x16xf32>
    %29 = vector.multi_reduction <maximumf>, %28, %cst_33 [2] : vector<2x4x5x16xf32> to vector<2x4x16xf32>
    %30 = vector.extract_strided_slice %29 {offsets = [0, 0, 0], sizes = [2, 4, 5], strides = [1, 1, 1]} : vector<2x4x16xf32> to vector<2x4x5xf32>
    %cst_34 = arith.constant dense<0xFF800000> : vector<2x4xf32>
    %31 = vector.multi_reduction <maximumf>, %30, %cst_34 [2] : vector<2x4x5xf32> to vector<2x4xf32>
    %32 = vector.shape_cast %31 : vector<2x4xf32> to vector<2x4x1xf32>
    %33 = vector.extract_strided_slice %29 {offsets = [0, 0, 5], sizes = [2, 4, 6], strides = [1, 1, 1]} : vector<2x4x16xf32> to vector<2x4x6xf32>
    %cst_35 = arith.constant dense<0xFF800000> : vector<2x4xf32>
    %34 = vector.multi_reduction <maximumf>, %33, %cst_35 [2] : vector<2x4x6xf32> to vector<2x4xf32>
    %35 = vector.shape_cast %34 : vector<2x4xf32> to vector<2x4x1xf32>
    %36 = vector.extract_strided_slice %29 {offsets = [0, 0, 11], sizes = [2, 4, 5], strides = [1, 1, 1]} : vector<2x4x16xf32> to vector<2x4x5xf32>
    %cst_36 = arith.constant dense<0xFF800000> : vector<2x4xf32>
    %37 = vector.multi_reduction <maximumf>, %36, %cst_36 [2] : vector<2x4x5xf32> to vector<2x4xf32>
    %38 = vector.shape_cast %37 : vector<2x4xf32> to vector<2x4x1xf32>
    %39 = tpu.concatenate %32, %35, %38 in 2 : vector<2x4x1xf32>, vector<2x4x1xf32>, vector<2x4x1xf32> -> vector<2x4x3xf32>
    %c0_37 = arith.constant 0 : index
    %c0_38 = arith.constant 0 : index
    %c5 = arith.constant 5 : index
    %40 = vector.load %arg3[%c0_37, %c0_38, %c5] : memref<2x4x14xf32, #tpu.memory_space<vmem>>, vector<2x4x3xf32>
    tpu.vector_store %arg3[%c0_37, %c0_38, %c5], %39 {strides = array<i32>} : memref<2x4x14xf32, #tpu.memory_space<vmem>>, vector<2x4x3xf32>,
    %c0_39 = arith.constant 0 : index
    %c0_40 = arith.constant 0 : index
    %c5_41 = arith.constant 5 : index
    %c0_42 = arith.constant 0 : index
    %41 = vector.load %arg2[%c0_39, %c0_40, %c5_41, %c0_42] : memref<2x4x16x16xf32, #tpu.memory_space<vmem>>, vector<2x4x6x16xf32>
    %cst_43 = arith.constant dense<0xFF800000> : vector<2x4x16xf32>
    %42 = vector.multi_reduction <maximumf>, %41, %cst_43 [2] : vector<2x4x6x16xf32> to vector<2x4x16xf32>
    %43 = vector.extract_strided_slice %42 {offsets = [0, 0, 0], sizes = [2, 4, 5], strides = [1, 1, 1]} : vector<2x4x16xf32> to vector<2x4x5xf32>
    %cst_44 = arith.constant dense<0xFF800000> : vector<2x4xf32>
    %44 = vector.multi_reduction <maximumf>, %43, %cst_44 [2] : vector<2x4x5xf32> to vector<2x4xf32>
    %45 = vector.shape_cast %44 : vector<2x4xf32> to vector<2x4x1xf32>
    %46 = vector.extract_strided_slice %42 {offsets = [0, 0, 5], sizes = [2, 4, 6], strides = [1, 1, 1]} : vector<2x4x16xf32> to vector<2x4x6xf32>
    %cst_45 = arith.constant dense<0xFF800000> : vector<2x4xf32>
    %47 = vector.multi_reduction <maximumf>, %46, %cst_45 [2] : vector<2x4x6xf32> to vector<2x4xf32>
    %48 = vector.shape_cast %47 : vector<2x4xf32> to vector<2x4x1xf32>
    %49 = vector.extract_strided_slice %42 {offsets = [0, 0, 11], sizes = [2, 4, 5], strides = [1, 1, 1]} : vector<2x4x16xf32> to vector<2x4x5xf32>
    %cst_46 = arith.constant dense<0xFF800000> : vector<2x4xf32>
    %50 = vector.multi_reduction <maximumf>, %49, %cst_46 [2] : vector<2x4x5xf32> to vector<2x4xf32>
    %51 = vector.shape_cast %50 : vector<2x4xf32> to vector<2x4x1xf32>
    %52 = tpu.concatenate %45, %48, %51 in 2 : vector<2x4x1xf32>, vector<2x4x1xf32>, vector<2x4x1xf32> -> vector<2x4x3xf32>
    %c0_47 = arith.constant 0 : index
    %c0_48 = arith.constant 0 : index
    %c8_49 = arith.constant 8 : index
    %53 = vector.load %arg3[%c0_47, %c0_48, %c8_49] : memref<2x4x14xf32, #tpu.memory_space<vmem>>, vector<2x4x3xf32>
    tpu.vector_store %arg3[%c0_47, %c0_48, %c8_49], %52 {strides = array<i32>} : memref<2x4x14xf32, #tpu.memory_space<vmem>>, vector<2x4x3xf32>,
    %c0_50 = arith.constant 0 : index
    %c0_51 = arith.constant 0 : index
    %c11 = arith.constant 11 : index
    %c0_52 = arith.constant 0 : index
    %54 = vector.load %arg2[%c0_50, %c0_51, %c11, %c0_52] : memref<2x4x16x16xf32, #tpu.memory_space<vmem>>, vector<2x4x5x16xf32>
    %cst_53 = arith.constant dense<0xFF800000> : vector<2x4x16xf32>
    %55 = vector.multi_reduction <maximumf>, %54, %cst_53 [2] : vector<2x4x5x16xf32> to vector<2x4x16xf32>
    %56 = vector.extract_strided_slice %55 {offsets = [0, 0, 0], sizes = [2, 4, 5], strides = [1, 1, 1]} : vector<2x4x16xf32> to vector<2x4x5xf32>
    %cst_54 = arith.constant dense<0xFF800000> : vector<2x4xf32>
    %57 = vector.multi_reduction <maximumf>, %56, %cst_54 [2] : vector<2x4x5xf32> to vector<2x4xf32>
    %58 = vector.shape_cast %57 : vector<2x4xf32> to vector<2x4x1xf32>
    %59 = vector.extract_strided_slice %55 {offsets = [0, 0, 5], sizes = [2, 4, 6], strides = [1, 1, 1]} : vector<2x4x16xf32> to vector<2x4x6xf32>
    %cst_55 = arith.constant dense<0xFF800000> : vector<2x4xf32>
    %60 = vector.multi_reduction <maximumf>, %59, %cst_55 [2] : vector<2x4x6xf32> to vector<2x4xf32>
    %61 = vector.shape_cast %60 : vector<2x4xf32> to vector<2x4x1xf32>
    %62 = vector.extract_strided_slice %55 {offsets = [0, 0, 11], sizes = [2, 4, 5], strides = [1, 1, 1]} : vector<2x4x16xf32> to vector<2x4x5xf32>
    %cst_56 = arith.constant dense<0xFF800000> : vector<2x4xf32>
    %63 = vector.multi_reduction <maximumf>, %62, %cst_56 [2] : vector<2x4x5xf32> to vector<2x4xf32>
    %64 = vector.shape_cast %63 : vector<2x4xf32> to vector<2x4x1xf32>
    %65 = tpu.concatenate %58, %61, %64 in 2 : vector<2x4x1xf32>, vector<2x4x1xf32>, vector<2x4x1xf32> -> vector<2x4x3xf32>
    %c0_57 = arith.constant 0 : index
    %c0_58 = arith.constant 0 : index
    %c11_59 = arith.constant 11 : index
    %66 = vector.load %arg3[%c0_57, %c0_58, %c11_59] : memref<2x4x14xf32, #tpu.memory_space<vmem>>, vector<2x4x3xf32>
    tpu.vector_store %arg3[%c0_57, %c0_58, %c11_59], %65 {strides = array<i32>} : memref<2x4x14xf32, #tpu.memory_space<vmem>>, vector<2x4x3xf32>,
    return
  }
  func.func @transform_0(%arg0: i32, %arg1: i32) -> (i32, i32, i32, i32) {
    %c0_i32 = arith.constant 0 : i32
    %c0_i32_0 = arith.constant 0 : i32
    %c0_i32_1 = arith.constant 0 : i32
    return %arg0, %arg1, %c0_i32, %c0_i32_0 : i32, i32, i32, i32
  }
  func.func @transform_1(%arg0: i32, %arg1: i32) -> (i32, i32, i32) {
    %c0_i32 = arith.constant 0 : i32
    %c0_i32_0 = arith.constant 0 : i32
    return %arg0, %arg1, %c0_i32 : i32, i32, i32
  }
}

</mosaic_0001>

<llo_original>
// kernel: tpu_custom_call.1
$region0: #{tpu_custom_call.1}
  #allocation0 [shape = 'u32[]', space=smem, size = 0x4, offset = 0x4, fixed_abs, tag = 'smem constant byte address 0x4 - core index']
  #allocation1 [shape = 'u32[144,128]{1,0:T(1,128)}', space=vmem, size = 0x12000, scoped, tag = 'internal scratch']
  %s0 = inlined_call_operand.hbm [shape: f32[2,4,16,16], index: 0, kind: input, shape index: {}]
  %s1 = inlined_call_operand.hbm [shape: f32[2,4,14], index: 1, kind: output, shape index: {}]
  %s2 = sld [smem:[#allocation0]]
  $region18: #{tpu_custom_call.1} parent=0
    _
  %s4 = ssub.s32 1, %s2
  %s5 = scalar_select 0, %s4, %s2
  $region1: #{tpu_custom_call.1} parent=0
    #allocation2 [shape = 'u8[65536]{0}', space=vmem, size = 0x10000, scoped, tag = 'input window, operand 0, single buffered']
    #allocation3 [shape = 's32[1]{0}', space=sflag, size = 0x4, scoped, tag = 'scoped memory for tpu_custom_call.1']
    #allocation4 [shape = 's32[1]{0}', space=sflag, size = 0x4, scoped, tag = 'scoped memory for tpu_custom_call.1']
    #allocation5 [shape = 'u8[4096]{0}', space=vmem, size = 0x1000, scoped, tag = 'output window, operand 0, single buffered']
    %6 = vsyncpa [#allocation3], 0
    %7 = vsyncpa [#allocation4], 0
    // Predicated region
    $region2: #{tpu_custom_call.1} parent=1 // pred_check
      _
    $region3: #{tpu_custom_call.1} parent=1 // pred_check_branch
      %9 = sbr.rel (0) target = $region5
    $region4: #{tpu_custom_call.1} parent=1 // pred_region
      %s11 = ssub.s32 2048, 2048
      %12 = vsyncadd [#allocation3], %s11
      %s13 = sshll.u32 [#allocation2], 4
      %s14 = int_to_ptr.vmem [resolvable:$true] %s13
      %19 = dma.hbm_to_vmem [thread:$0]  %s0, 2048, %s14, [#allocation3], 128, 128, 8
    $region5: #{tpu_custom_call.1} parent=1 // pred_fallthru
      _
    // Predicated region
    $region6: #{tpu_custom_call.1} parent=1 // pred_check
      _
    $region7: #{tpu_custom_call.1} parent=1 // pred_check_branch
      %21 = sbr.rel (0) target = $region9
    $region8: #{tpu_custom_call.1} parent=1 // pred_region
      %22 = dma.done [#allocation3], 2048
    $region9: #{tpu_custom_call.1} parent=1 // pred_fallthru
      _
    %v23 = vld [vmem:[#allocation2] sm:$0xff]
    %v24 = vld [vmem:[#allocation2 + $0x10] sm:$0xff]
    %v25 = vld [vmem:[#allocation2 + $0x20] sm:$0xff]
    %v26 = vld [vmem:[#allocation2 + $0x30] sm:$0xff]
    %v27 = vld [vmem:[#allocation2 + $0x40] sm:$0xff]
    %v28 = vld [vmem:[#allocation2 + $0x50] sm:$0xff]
    %v29 = vld [vmem:[#allocation2 + $0x60] sm:$0xff]
    %v30 = vld [vmem:[#allocation2 + $0x70] sm:$0xff]
    %vm31 = vcmask 130048
    %v32 = vsel %vm31, %v23, -inf
    %v33 = vrot.slane %v32, 4
    %v34 = vmax.f32 %v32, %v33
    %v35 = vrot.slane %v34, 2
    %v36 = vmax.f32 %v34, %v35
    %v37 = vrot.slane %v36, 1
    %v38 = vmax.f32 %v36, %v37
    %v39 = vsel %vm31, %v24, -inf
    %v40 = vrot.slane %v39, 4
    %v41 = vmax.f32 %v39, %v40
    %v42 = vrot.slane %v41, 2
    %v43 = vmax.f32 %v41, %v42
    %v44 = vrot.slane %v43, 1
    %v45 = vmax.f32 %v43, %v44
    %v46 = vsel %vm31, %v25, -inf
    %v47 = vrot.slane %v46, 4
    %v48 = vmax.f32 %v46, %v47
    %v49 = vrot.slane %v48, 2
    %v50 = vmax.f32 %v48, %v49
    %v51 = vrot.slane %v50, 1
    %v52 = vmax.f32 %v50, %v51
    %v53 = vsel %vm31, %v26, -inf
    %v54 = vrot.slane %v53, 4
    %v55 = vmax.f32 %v53, %v54
    %v56 = vrot.slane %v55, 2
    %v57 = vmax.f32 %v55, %v56
    %v58 = vrot.slane %v57, 1
    %v59 = vmax.f32 %v57, %v58
    %v60 = vsel %vm31, %v27, -inf
    %v61 = vrot.slane %v60, 4
    %v62 = vmax.f32 %v60, %v61
    %v63 = vrot.slane %v62, 2
    %v64 = vmax.f32 %v62, %v63
    %v65 = vrot.slane %v64, 1
    %v66 = vmax.f32 %v64, %v65
    %v67 = vsel %vm31, %v28, -inf
    %v68 = vrot.slane %v67, 4
    %v69 = vmax.f32 %v67, %v68
    %v70 = vrot.slane %v69, 2
    %v71 = vmax.f32 %v69, %v70
    %v72 = vrot.slane %v71, 1
    %v73 = vmax.f32 %v71, %v72
    %v74 = vsel %vm31, %v29, -inf
    %v75 = vrot.slane %v74, 4
    %v76 = vmax.f32 %v74, %v75
    %v77 = vrot.slane %v76, 2
    %v78 = vmax.f32 %v76, %v77
    %v79 = vrot.slane %v78, 1
    %v80 = vmax.f32 %v78, %v79
    %v81 = vsel %vm31, %v30, -inf
    %v82 = vrot.slane %v81, 4
    %v83 = vmax.f32 %v81, %v82
    %v84 = vrot.slane %v83, 2
    %v85 = vmax.f32 %v83, %v84
    %v86 = vrot.slane %v85, 1
    %v87 = vmax.f32 %v85, %v86
    %v88 = vld [vmem:[#allocation2 + $0x8] sm:$0xff]
    %v89 = vld [vmem:[#allocation2 + $0x18] sm:$0xff]
    %v90 = vld [vmem:[#allocation2 + $0x28] sm:$0xff]
    %v91 = vld [vmem:[#allocation2 + $0x38] sm:$0xff]
    %v92 = vld [vmem:[#allocation2 + $0x48] sm:$0xff]
    %v93 = vld [vmem:[#allocation2 + $0x58] sm:$0xff]
    %v94 = vld [vmem:[#allocation2 + $0x68] sm:$0xff]
    %v95 = vld [vmem:[#allocation2 + $0x78] sm:$0xff]
    %v96 = vsel %vm31, %v88, -inf
    %v97 = vrot.slane %v96, 4
    %v98 = vmax.f32 %v96, %v97
    %v99 = vrot.slane %v98, 2
    %v100 = vmax.f32 %v98, %v99
    %v101 = vrot.slane %v100, 1
    %v102 = vmax.f32 %v100, %v101
    %v103 = vsel %vm31, %v89, -inf
    %v104 = vrot.slane %v103, 4
    %v105 = vmax.f32 %v103, %v104
    %v106 = vrot.slane %v105, 2
    %v107 = vmax.f32 %v105, %v106
    %v108 = vrot.slane %v107, 1
    %v109 = vmax.f32 %v107, %v108
    %v110 = vsel %vm31, %v90, -inf
    %v111 = vrot.slane %v110, 4
    %v112 = vmax.f32 %v110, %v111
    %v113 = vrot.slane %v112, 2
    %v114 = vmax.f32 %v112, %v113
    %v115 = vrot.slane %v114, 1
    %v116 = vmax.f32 %v114, %v115
    %v117 = vsel %vm31, %v91, -inf
    %v118 = vrot.slane %v117, 4
    %v119 = vmax.f32 %v117, %v118
    %v120 = vrot.slane %v119, 2
    %v121 = vmax.f32 %v119, %v120
    %v122 = vrot.slane %v121, 1
    %v123 = vmax.f32 %v121, %v122
    %v124 = vsel %vm31, %v92, -inf
    %v125 = vrot.slane %v124, 4
    %v126 = vmax.f32 %v124, %v125
    %v127 = vrot.slane %v126, 2
    %v128 = vmax.f32 %v126, %v127
    %v129 = vrot.slane %v128, 1
    %v130 = vmax.f32 %v128, %v129
    %v131 = vsel %vm31, %v93, -inf
    %v132 = vrot.slane %v131, 4
    %v133 = vmax.f32 %v131, %v132
    %v134 = vrot.slane %v133, 2
    %v135 = vmax.f32 %v133, %v134
    %v136 = vrot.slane %v135, 1
    %v137 = vmax.f32 %v135, %v136
    %v138 = vsel %vm31, %v94, -inf
    %v139 = vrot.slane %v138, 4
    %v140 = vmax.f32 %v138, %v139
    %v141 = vrot.slane %v140, 2
    %v142 = vmax.f32 %v140, %v141
    %v143 = vrot.slane %v142, 1
    %v144 = vmax.f32 %v142, %v143
    %v145 = vsel %vm31, %v95, -inf
    %v146 = vrot.slane %v145, 4
    %v147 = vmax.f32 %v145, %v146
    %v148 = vrot.slane %v147, 2
    %v149 = vmax.f32 %v147, %v148
    %v150 = vrot.slane %v149, 1
    %v151 = vmax.f32 %v149, %v150
    %v152 = vmax.f32 %v38, %v102
    %v153 = vmax.f32 %v45, %v109
    %v154 = vmax.f32 %v52, %v116
    %v155 = vmax.f32 %v59, %v123
    %v156 = vmax.f32 %v66, %v130
    %v157 = vmax.f32 %v73, %v137
    %v158 = vmax.f32 %v80, %v144
    %v159 = vmax.f32 %v87, %v151
    %vm168 = vcmask 1041409
    %v169 = vsel %vm168, %v153, %v152
    %vm170 = vcmask 1042434
    %v171 = vsel %vm170, %v154, %v169
    %vm172 = vcmask 1043459
    %v173 = vsel %vm172, %v155, %v171
    %v174 = vsel %vm168, %v157, %v156
    %v175 = vsel %vm170, %v158, %v174
    %v176 = vsel %vm172, %v159, %v175
    %vm179 = vcmask 125952
    %v180 = vsel %vm179, %v173, -inf
    %181 = vmax.xlane.f32.xlu0 %v180
    %v182 = vpop.xlane.xlu0 %181
    %v183 = vsel %vm179, %v176, -inf
    %184 = vmax.xlane.f32.xlu0 %v183
    %v185 = vpop.xlane.xlu0 %184
    %vm186 = vcmask 3072
    %187 = vst.msk [vmem:[#allocation5] sm:$0xf] %vm186, %v182
    %188 = vst.msk [vmem:[#allocation5 + $0x4] sm:$0xf] %vm186, %v185
    %v189 = vld [vmem:[#allocation2] sm:$0xff]
    %v190 = vld [vmem:[#allocation2 + $0x10] sm:$0xff]
    %v191 = vld [vmem:[#allocation2 + $0x20] sm:$0xff]
    %v192 = vld [vmem:[#allocation2 + $0x30] sm:$0xff]
    %v193 = vld [vmem:[#allocation2 + $0x40] sm:$0xff]
    %v194 = vld [vmem:[#allocation2 + $0x50] sm:$0xff]
    %v195 = vld [vmem:[#allocation2 + $0x60] sm:$0xff]
    %v196 = vld [vmem:[#allocation2 + $0x70] sm:$0xff]
    %v197 = vsel %vm31, %v189, -inf
    %v198 = vrot.slane %v197, 4
    %v199 = vmax.f32 %v197, %v198
    %v200 = vrot.slane %v199, 2
    %v201 = vmax.f32 %v199, %v200
    %v202 = vrot.slane %v201, 1
    %v203 = vmax.f32 %v201, %v202
    %v204 = vsel %vm31, %v190, -inf
    %v205 = vrot.slane %v204, 4
    %v206 = vmax.f32 %v204, %v205
    %v207 = vrot.slane %v206, 2
    %v208 = vmax.f32 %v206, %v207
    %v209 = vrot.slane %v208, 1
    %v210 = vmax.f32 %v208, %v209
    %v211 = vsel %vm31, %v191, -inf
    %v212 = vrot.slane %v211, 4
    %v213 = vmax.f32 %v211, %v212
    %v214 = vrot.slane %v213, 2
    %v215 = vmax.f32 %v213, %v214
    %v216 = vrot.slane %v215, 1
    %v217 = vmax.f32 %v215, %v216
    %v218 = vsel %vm31, %v192, -inf
    %v219 = vrot.slane %v218, 4
    %v220 = vmax.f32 %v218, %v219
    %v221 = vrot.slane %v220, 2
    %v222 = vmax.f32 %v220, %v221
    %v223 = vrot.slane %v222, 1
    %v224 = vmax.f32 %v222, %v223
    %v225 = vsel %vm31, %v193, -inf
    %v226 = vrot.slane %v225, 4
    %v227 = vmax.f32 %v225, %v226
    %v228 = vrot.slane %v227, 2
    %v229 = vmax.f32 %v227, %v228
    %v230 = vrot.slane %v229, 1
    %v231 = vmax.f32 %v229, %v230
    %v232 = vsel %vm31, %v194, -inf
    %v233 = vrot.slane %v232, 4
    %v234 = vmax.f32 %v232, %v233
    %v235 = vrot.slane %v234, 2
    %v236 = vmax.f32 %v234, %v235
    %v237 = vrot.slane %v236, 1
    %v238 = vmax.f32 %v236, %v237
    %v239 = vsel %vm31, %v195, -inf
    %v240 = vrot.slane %v239, 4
    %v241 = vmax.f32 %v239, %v240
    %v242 = vrot.slane %v241, 2
    %v243 = vmax.f32 %v241, %v242
    %v244 = vrot.slane %v243, 1
    %v245 = vmax.f32 %v243, %v244
    %v246 = vsel %vm31, %v196, -inf
    %v247 = vrot.slane %v246, 4
    %v248 = vmax.f32 %v246, %v247
    %v249 = vrot.slane %v248, 2
    %v250 = vmax.f32 %v248, %v249
    %v251 = vrot.slane %v250, 1
    %v252 = vmax.f32 %v250, %v251
    %v261 = vsel %vm168, %v210, %v203
    %v262 = vsel %vm170, %v217, %v261
    %v263 = vsel %vm172, %v224, %v262
    %v264 = vsel %vm168, %v238, %v231
    %v265 = vsel %vm170, %v245, %v264
    %v266 = vsel %vm172, %v252, %v265
    %vm269 = vcmask 60416
    %v270 = vsel %vm269, %v263, -inf
    %271 = vmax.xlane.f32.xlu0 %v270
    %v272 = vpop.xlane.xlu0 %271
    %v273 = vsel %vm269, %v266, -inf
    %274 = vmax.xlane.f32.xlu0 %v273
    %v275 = vpop.xlane.xlu0 %274
    %vm276 = vcmask 126016
    %v277 = vsel %vm276, %v263, -inf
    %278 = vmax.xlane.f32.xlu0 %v277
    %v279 = vpop.xlane.xlu0 %278
    %v280 = vsel %vm276, %v266, -inf
    %281 = vmax.xlane.f32.xlu0 %v280
    %v282 = vpop.xlane.xlu0 %281
    %vm283 = vcmask 7168
    %v284 = vsel %vm283, %v272, %v279
    %v285 = vsel %vm283, %v275, %v282
    %288 = vrot.lane.b32.xlu0 %v284, 1
    %v289 = vpop.permute.xlu0 %288
    %290 = vrot.lane.b32.xlu0 %v285, 1
    %v291 = vpop.permute.xlu0 %290
    %vm294 = vcmask 19464
    %295 = vst.msk [vmem:[#allocation5] sm:$0xf] %vm294, %v289
    %296 = vst.msk [vmem:[#allocation5 + $0x4] sm:$0xf] %vm294, %v291
    %v297 = vld [vmem:[#allocation2 + $0x8] sm:$0xff]
    %v298 = vld [vmem:[#allocation2 + $0x18] sm:$0xff]
    %v299 = vld [vmem:[#allocation2 + $0x28] sm:$0xff]
    %v300 = vld [vmem:[#allocation2 + $0x38] sm:$0xff]
    %v301 = vld [vmem:[#allocation2 + $0x48] sm:$0xff]
    %v302 = vld [vmem:[#allocation2 + $0x58] sm:$0xff]
    %v303 = vld [vmem:[#allocation2 + $0x68] sm:$0xff]
    %v304 = vld [vmem:[#allocation2 + $0x78] sm:$0xff]
    %v305 = vsel %vm31, %v297, -inf
    %v306 = vrot.slane %v305, 4
    %v307 = vmax.f32 %v305, %v306
    %v308 = vrot.slane %v307, 2
    %v309 = vmax.f32 %v307, %v308
    %v310 = vrot.slane %v309, 1
    %v311 = vmax.f32 %v309, %v310
    %v312 = vsel %vm31, %v298, -inf
    %v313 = vrot.slane %v312, 4
    %v314 = vmax.f32 %v312, %v313
    %v315 = vrot.slane %v314, 2
    %v316 = vmax.f32 %v314, %v315
    %v317 = vrot.slane %v316, 1
    %v318 = vmax.f32 %v316, %v317
    %v319 = vsel %vm31, %v299, -inf
    %v320 = vrot.slane %v319, 4
    %v321 = vmax.f32 %v319, %v320
    %v322 = vrot.slane %v321, 2
    %v323 = vmax.f32 %v321, %v322
    %v324 = vrot.slane %v323, 1
    %v325 = vmax.f32 %v323, %v324
    %v326 = vsel %vm31, %v300, -inf
    %v327 = vrot.slane %v326, 4
    %v328 = vmax.f32 %v326, %v327
    %v329 = vrot.slane %v328, 2
    %v330 = vmax.f32 %v328, %v329
    %v331 = vrot.slane %v330, 1
    %v332 = vmax.f32 %v330, %v331
    %v333 = vsel %vm31, %v301, -inf
    %v334 = vrot.slane %v333, 4
    %v335 = vmax.f32 %v333, %v334
    %v336 = vrot.slane %v335, 2
    %v337 = vmax.f32 %v335, %v336
    %v338 = vrot.slane %v337, 1
    %v339 = vmax.f32 %v337, %v338
    %v340 = vsel %vm31, %v302, -inf
    %v341 = vrot.slane %v340, 4
    %v342 = vmax.f32 %v340, %v341
    %v343 = vrot.slane %v342, 2
    %v344 = vmax.f32 %v342, %v343
    %v345 = vrot.slane %v344, 1
    %v346 = vmax.f32 %v344, %v345
    %v347 = vsel %vm31, %v303, -inf
    %v348 = vrot.slane %v347, 4
    %v349 = vmax.f32 %v347, %v348
    %v350 = vrot.slane %v349, 2
    %v351 = vmax.f32 %v349, %v350
    %v352 = vrot.slane %v351, 1
    %v353 = vmax.f32 %v351, %v352
    %v354 = vsel %vm31, %v304, -inf
    %v355 = vrot.slane %v354, 4
    %v356 = vmax.f32 %v354, %v355
    %v357 = vrot.slane %v356, 2
    %v358 = vmax.f32 %v356, %v357
    %v359 = vrot.slane %v358, 1
    %v360 = vmax.f32 %v358, %v359
    %v369 = vsel %vm168, %v318, %v311
    %v370 = vsel %vm170, %v325, %v369
    %v371 = vsel %vm172, %v332, %v370
    %v372 = vsel %vm168, %v346, %v339
    %v373 = vsel %vm170, %v353, %v372
    %v374 = vsel %vm172, %v360, %v373
    %v377 = vsel %vm269, %v371, -inf
    %378 = vmax.xlane.f32.xlu0 %v377
    %v379 = vpop.xlane.xlu0 %378
    %v380 = vsel %vm269, %v374, -inf
    %381 = vmax.xlane.f32.xlu0 %v380
    %v382 = vpop.xlane.xlu0 %381
    %v383 = vsel %vm276, %v371, -inf
    %384 = vmax.xlane.f32.xlu0 %v383
    %v385 = vpop.xlane.xlu0 %384
    %v386 = vsel %vm276, %v374, -inf
    %387 = vmax.xlane.f32.xlu0 %v386
    %v388 = vpop.xlane.xlu0 %387
    %v389 = vsel %vm283, %v379, %v385
    %v390 = vsel %vm283, %v382, %v388
    %393 = vrot.lane.b32.xlu0 %v389, 3
    %v394 = vpop.permute.xlu0 %393
    %395 = vrot.lane.b32.xlu0 %v390, 3
    %v396 = vpop.permute.xlu0 %395
    %vm399 = vcmask 35864
    %400 = vst.msk [vmem:[#allocation5] sm:$0xf] %vm399, %v394
    %401 = vst.msk [vmem:[#allocation5 + $0x4] sm:$0xf] %vm399, %v396
    %v402 = vld [vmem:[#allocation2] sm:$0x1f]
    %v403 = vld [vmem:[#allocation2 + $0x10] sm:$0x1f]
    %v404 = vld [vmem:[#allocation2 + $0x20] sm:$0x1f]
    %v405 = vld [vmem:[#allocation2 + $0x30] sm:$0x1f]
    %v406 = vld [vmem:[#allocation2 + $0x40] sm:$0x1f]
    %v407 = vld [vmem:[#allocation2 + $0x50] sm:$0x1f]
    %v408 = vld [vmem:[#allocation2 + $0x60] sm:$0x1f]
    %v409 = vld [vmem:[#allocation2 + $0x70] sm:$0x1f]
    %vm410 = vcmask 126976
    %v411 = vsel %vm410, %v402, -inf
    %v412 = vrot.slane %v411, 4
    %v413 = vmax.f32 %v411, %v412
    %v414 = vrot.slane %v413, 2
    %v415 = vmax.f32 %v413, %v414
    %v416 = vrot.slane %v415, 1
    %v417 = vmax.f32 %v415, %v416
    %v418 = vsel %vm410, %v403, -inf
    %v419 = vrot.slane %v418, 4
    %v420 = vmax.f32 %v418, %v419
    %v421 = vrot.slane %v420, 2
    %v422 = vmax.f32 %v420, %v421
    %v423 = vrot.slane %v422, 1
    %v424 = vmax.f32 %v422, %v423
    %v425 = vsel %vm410, %v404, -inf
    %v426 = vrot.slane %v425, 4
    %v427 = vmax.f32 %v425, %v426
    %v428 = vrot.slane %v427, 2
    %v429 = vmax.f32 %v427, %v428
    %v430 = vrot.slane %v429, 1
    %v431 = vmax.f32 %v429, %v430
    %v432 = vsel %vm410, %v405, -inf
    %v433 = vrot.slane %v432, 4
    %v434 = vmax.f32 %v432, %v433
    %v435 = vrot.slane %v434, 2
    %v436 = vmax.f32 %v434, %v435
    %v437 = vrot.slane %v436, 1
    %v438 = vmax.f32 %v436, %v437
    %v439 = vsel %vm410, %v406, -inf
    %v440 = vrot.slane %v439, 4
    %v441 = vmax.f32 %v439, %v440
    %v442 = vrot.slane %v441, 2
    %v443 = vmax.f32 %v441, %v442
    %v444 = vrot.slane %v443, 1
    %v445 = vmax.f32 %v443, %v444
    %v446 = vsel %vm410, %v407, -inf
    %v447 = vrot.slane %v446, 4
    %v448 = vmax.f32 %v446, %v447
    %v449 = vrot.slane %v448, 2
    %v450 = vmax.f32 %v448, %v449
    %v451 = vrot.slane %v450, 1
    %v452 = vmax.f32 %v450, %v451
    %v453 = vsel %vm410, %v408, -inf
    %v454 = vrot.slane %v453, 4
    %v455 = vmax.f32 %v453, %v454
    %v456 = vrot.slane %v455, 2
    %v457 = vmax.f32 %v455, %v456
    %v458 = vrot.slane %v457, 1
    %v459 = vmax.f32 %v457, %v458
    %v460 = vsel %vm410, %v409, -inf
    %v461 = vrot.slane %v460, 4
    %v462 = vmax.f32 %v460, %v461
    %v463 = vrot.slane %v462, 2
    %v464 = vmax.f32 %v462, %v463
    %v465 = vrot.slane %v464, 1
    %v466 = vmax.f32 %v464, %v465
    %v475 = vsel %vm168, %v424, %v417
    %v476 = vsel %vm170, %v431, %v475
    %v477 = vsel %vm172, %v438, %v476
    %v478 = vsel %vm168, %v452, %v445
    %v479 = vsel %vm170, %v459, %v478
    %v480 = vsel %vm172, %v466, %v479
    %vm483 = vcmask 35840
    %v484 = vsel %vm483, %v477, -inf
    %485 = vmax.xlane.f32.xlu0 %v484
    %v486 = vpop.xlane.xlu0 %485
    %v487 = vsel %vm483, %v480, -inf
    %488 = vmax.xlane.f32.xlu0 %v487
    %v489 = vpop.xlane.xlu0 %488
    %vm490 = vcmask 85032
    %v491 = vsel %vm490, %v477, -inf
    %492 = vmax.xlane.f32.xlu0 %v491
    %v493 = vpop.xlane.xlu0 %492
    %v494 = vsel %vm490, %v480, -inf
    %495 = vmax.xlane.f32.xlu0 %v494
    %v496 = vpop.xlane.xlu0 %495
    %vm497 = vcmask 126040
    %v498 = vsel %vm497, %v477, -inf
    %499 = vmax.xlane.f32.xlu0 %v498
    %v500 = vpop.xlane.xlu0 %499
    %v501 = vsel %vm497, %v480, -inf
    %502 = vmax.xlane.f32.xlu0 %v501
    %v503 = vpop.xlane.xlu0 %502
    %v504 = vsel %vm283, %v486, %v493
    %v505 = vsel %vm283, %v489, %v496
    %vm506 = vcmask 15360
    %v507 = vsel %vm506, %v504, %v500
    %v508 = vsel %vm506, %v505, %v503
    %511 = vrot.lane.b32.xlu0 %v507, 5
    %v512 = vpop.permute.xlu0 %511
    %513 = vrot.lane.b32.xlu0 %v508, 5
    %v514 = vpop.permute.xlu0 %513
    %vm517 = vcmask 60456
    %518 = vst.msk [vmem:[#allocation5] sm:$0xf] %vm517, %v512
    %519 = vst.msk [vmem:[#allocation5 + $0x4] sm:$0xf] %vm517, %v514
    %v520 = vld [vmem:[#allocation2 + $0x5] sm:$0x3f]
    %v521 = vld [vmem:[#allocation2 + $0x15] sm:$0x3f]
    %v522 = vld [vmem:[#allocation2 + $0x25] sm:$0x3f]
    %v523 = vld [vmem:[#allocation2 + $0x35] sm:$0x3f]
    %v524 = vld [vmem:[#allocation2 + $0x45] sm:$0x3f]
    %v525 = vld [vmem:[#allocation2 + $0x55] sm:$0x3f]
    %v526 = vld [vmem:[#allocation2 + $0x65] sm:$0x3f]
    %v527 = vld [vmem:[#allocation2 + $0x75] sm:$0x3f]
    %vm528 = vcmask 128000
    %v529 = vsel %vm528, %v520, -inf
    %v530 = vrot.slane %v529, 4
    %v531 = vmax.f32 %v529, %v530
    %v532 = vrot.slane %v531, 2
    %v533 = vmax.f32 %v531, %v532
    %v534 = vrot.slane %v533, 1
    %v535 = vmax.f32 %v533, %v534
    %v536 = vsel %vm528, %v521, -inf
    %v537 = vrot.slane %v536, 4
    %v538 = vmax.f32 %v536, %v537
    %v539 = vrot.slane %v538, 2
    %v540 = vmax.f32 %v538, %v539
    %v541 = vrot.slane %v540, 1
    %v542 = vmax.f32 %v540, %v541
    %v543 = vsel %vm528, %v522, -inf
    %v544 = vrot.slane %v543, 4
    %v545 = vmax.f32 %v543, %v544
    %v546 = vrot.slane %v545, 2
    %v547 = vmax.f32 %v545, %v546
    %v548 = vrot.slane %v547, 1
    %v549 = vmax.f32 %v547, %v548
    %v550 = vsel %vm528, %v523, -inf
    %v551 = vrot.slane %v550, 4
    %v552 = vmax.f32 %v550, %v551
    %v553 = vrot.slane %v552, 2
    %v554 = vmax.f32 %v552, %v553
    %v555 = vrot.slane %v554, 1
    %v556 = vmax.f32 %v554, %v555
    %v557 = vsel %vm528, %v524, -inf
    %v558 = vrot.slane %v557, 4
    %v559 = vmax.f32 %v557, %v558
    %v560 = vrot.slane %v559, 2
    %v561 = vmax.f32 %v559, %v560
    %v562 = vrot.slane %v561, 1
    %v563 = vmax.f32 %v561, %v562
    %v564 = vsel %vm528, %v525, -inf
    %v565 = vrot.slane %v564, 4
    %v566 = vmax.f32 %v564, %v565
    %v567 = vrot.slane %v566, 2
    %v568 = vmax.f32 %v566, %v567
    %v569 = vrot.slane %v568, 1
    %v570 = vmax.f32 %v568, %v569
    %v571 = vsel %vm528, %v526, -inf
    %v572 = vrot.slane %v571, 4
    %v573 = vmax.f32 %v571, %v572
    %v574 = vrot.slane %v573, 2
    %v575 = vmax.f32 %v573, %v574
    %v576 = vrot.slane %v575, 1
    %v577 = vmax.f32 %v575, %v576
    %v578 = vsel %vm528, %v527, -inf
    %v579 = vrot.slane %v578, 4
    %v580 = vmax.f32 %v578, %v579
    %v581 = vrot.slane %v580, 2
    %v582 = vmax.f32 %v580, %v581
    %v583 = vrot.slane %v582, 1
    %v584 = vmax.f32 %v582, %v583
    %v593 = vsel %vm168, %v542, %v535
    %v594 = vsel %vm170, %v549, %v593
    %v595 = vsel %vm172, %v556, %v594
    %v596 = vsel %vm168, %v570, %v563
    %v597 = vsel %vm170, %v577, %v596
    %v598 = vsel %vm172, %v584, %v597
    %v601 = vsel %vm483, %v595, -inf
    %602 = vmax.xlane.f32.xlu0 %v601
    %v603 = vpop.xlane.xlu0 %602
    %v604 = vsel %vm483, %v598, -inf
    %605 = vmax.xlane.f32.xlu0 %v604
    %v606 = vpop.xlane.xlu0 %605
    %v607 = vsel %vm490, %v595, -inf
    %608 = vmax.xlane.f32.xlu0 %v607
    %v609 = vpop.xlane.xlu0 %608
    %v610 = vsel %vm490, %v598, -inf
    %611 = vmax.xlane.f32.xlu0 %v610
    %v612 = vpop.xlane.xlu0 %611
    %v613 = vsel %vm497, %v595, -inf
    %614 = vmax.xlane.f32.xlu0 %v613
    %v615 = vpop.xlane.xlu0 %614
    %v616 = vsel %vm497, %v598, -inf
    %617 = vmax.xlane.f32.xlu0 %v616
    %v618 = vpop.xlane.xlu0 %617
    %v619 = vsel %vm283, %v603, %v609
    %v620 = vsel %vm283, %v606, %v612
    %v621 = vsel %vm506, %v619, %v615
    %v622 = vsel %vm506, %v620, %v618
    %625 = vrot.lane.b32.xlu0 %v621, 8
    %v626 = vpop.permute.xlu0 %625
    %627 = vrot.lane.b32.xlu0 %v622, 8
    %v628 = vpop.permute.xlu0 %627
    %vm631 = vcmask 85056
    %632 = vst.msk [vmem:[#allocation5] sm:$0xf] %vm631, %v626
    %633 = vst.msk [vmem:[#allocation5 + $0x4] sm:$0xf] %vm631, %v628
    %v634 = vld [vmem:[#allocation2 + $0xb] sm:$0x1f]
    %v635 = vld [vmem:[#allocation2 + $0x1b] sm:$0x1f]
    %v636 = vld [vmem:[#allocation2 + $0x2b] sm:$0x1f]
    %v637 = vld [vmem:[#allocation2 + $0x3b] sm:$0x1f]
    %v638 = vld [vmem:[#allocation2 + $0x4b] sm:$0x1f]
    %v639 = vld [vmem:[#allocation2 + $0x5b] sm:$0x1f]
    %v640 = vld [vmem:[#allocation2 + $0x6b] sm:$0x1f]
    %v641 = vld [vmem:[#allocation2 + $0x7b] sm:$0x1f]
    %v642 = vsel %vm410, %v634, -inf
    %v643 = vrot.slane %v642, 4
    %v644 = vmax.f32 %v642, %v643
    %v645 = vrot.slane %v644, 2
    %v646 = vmax.f32 %v644, %v645
    %v647 = vrot.slane %v646, 1
    %v648 = vmax.f32 %v646, %v647
    %v649 = vsel %vm410, %v635, -inf
    %v650 = vrot.slane %v649, 4
    %v651 = vmax.f32 %v649, %v650
    %v652 = vrot.slane %v651, 2
    %v653 = vmax.f32 %v651, %v652
    %v654 = vrot.slane %v653, 1
    %v655 = vmax.f32 %v653, %v654
    %v656 = vsel %vm410, %v636, -inf
    %v657 = vrot.slane %v656, 4
    %v658 = vmax.f32 %v656, %v657
    %v659 = vrot.slane %v658, 2
    %v660 = vmax.f32 %v658, %v659
    %v661 = vrot.slane %v660, 1
    %v662 = vmax.f32 %v660, %v661
    %v663 = vsel %vm410, %v637, -inf
    %v664 = vrot.slane %v663, 4
    %v665 = vmax.f32 %v663, %v664
    %v666 = vrot.slane %v665, 2
    %v667 = vmax.f32 %v665, %v666
    %v668 = vrot.slane %v667, 1
    %v669 = vmax.f32 %v667, %v668
    %v670 = vsel %vm410, %v638, -inf
    %v671 = vrot.slane %v670, 4
    %v672 = vmax.f32 %v670, %v671
    %v673 = vrot.slane %v672, 2
    %v674 = vmax.f32 %v672, %v673
    %v675 = vrot.slane %v674, 1
    %v676 = vmax.f32 %v674, %v675
    %v677 = vsel %vm410, %v639, -inf
    %v678 = vrot.slane %v677, 4
    %v679 = vmax.f32 %v677, %v678
    %v680 = vrot.slane %v679, 2
    %v681 = vmax.f32 %v679, %v680
    %v682 = vrot.slane %v681, 1
    %v683 = vmax.f32 %v681, %v682
    %v684 = vsel %vm410, %v640, -inf
    %v685 = vrot.slane %v684, 4
    %v686 = vmax.f32 %v684, %v685
    %v687 = vrot.slane %v686, 2
    %v688 = vmax.f32 %v686, %v687
    %v689 = vrot.slane %v688, 1
    %v690 = vmax.f32 %v688, %v689
    %v691 = vsel %vm410, %v641, -inf
    %v692 = vrot.slane %v691, 4
    %v693 = vmax.f32 %v691, %v692
    %v694 = vrot.slane %v693, 2
    %v695 = vmax.f32 %v693, %v694
    %v696 = vrot.slane %v695, 1
    %v697 = vmax.f32 %v695, %v696
    %v706 = vsel %vm168, %v655, %v648
    %v707 = vsel %vm170, %v662, %v706
    %v708 = vsel %vm172, %v669, %v707
    %v709 = vsel %vm168, %v683, %v676
    %v710 = vsel %vm170, %v690, %v709
    %v711 = vsel %vm172, %v697, %v710
    %v714 = vsel %vm483, %v708, -inf
    %715 = vmax.xlane.f32.xlu0 %v714
    %v716 = vpop.xlane.xlu0 %715
    %v717 = vsel %vm483, %v711, -inf
    %718 = vmax.xlane.f32.xlu0 %v717
    %v719 = vpop.xlane.xlu0 %718
    %v720 = vsel %vm490, %v708, -inf
    %721 = vmax.xlane.f32.xlu0 %v720
    %v722 = vpop.xlane.xlu0 %721
    %v723 = vsel %vm490, %v711, -inf
    %724 = vmax.xlane.f32.xlu0 %v723
    %v725 = vpop.xlane.xlu0 %724
    %v726 = vsel %vm497, %v708, -inf
    %727 = vmax.xlane.f32.xlu0 %v726
    %v728 = vpop.xlane.xlu0 %727
    %v729 = vsel %vm497, %v711, -inf
    %730 = vmax.xlane.f32.xlu0 %v729
    %v731 = vpop.xlane.xlu0 %730
    %v732 = vsel %vm283, %v716, %v722
    %v733 = vsel %vm283, %v719, %v725
    %v734 = vsel %vm506, %v732, %v728
    %v735 = vsel %vm506, %v733, %v731
    %738 = vrot.lane.b32.xlu0 %v734, 11
    %v739 = vpop.permute.xlu0 %738
    %740 = vrot.lane.b32.xlu0 %v735, 11
    %v741 = vpop.permute.xlu0 %740
    %vm744 = vcmask 109656
    %745 = vst.msk [vmem:[#allocation5] sm:$0xf] %vm744, %v739
    %746 = vst.msk [vmem:[#allocation5 + $0x4] sm:$0xf] %vm744, %v741
    // Predicated region
    $region10: #{tpu_custom_call.1} parent=1 // pred_check
      _
    $region11: #{tpu_custom_call.1} parent=1 // pred_check_branch
      %748 = sbr.rel (0) target = $region13
    $region12: #{tpu_custom_call.1} parent=1 // pred_region
      %s750 = ssub.s32 128, 128
      %751 = vsyncadd [#allocation4], %s750
      %s752 = sshll.u32 [#allocation5], 4
      %s753 = int_to_ptr.vmem [resolvable:$true] %s752
      %758 = dma.vmem_to_hbm [thread:$0]  %s753, 128, %s1, [#allocation4], 64, 64, 4
    $region13: #{tpu_custom_call.1} parent=1 // pred_fallthru
      _
    // Predicated region
    $region14: #{tpu_custom_call.1} parent=1 // pred_check
      _
    $region15: #{tpu_custom_call.1} parent=1 // pred_check_branch
      %760 = sbr.rel (0) target = $region17
    $region16: #{tpu_custom_call.1} parent=1 // pred_region
      %761 = dma.done [#allocation4], 128
    $region17: #{tpu_custom_call.1} parent=1 // pred_fallthru
      _
    %762 = vsyncpa [#allocation3], 1
    %763 = vsyncpa [#allocation4], 1

</llo_original>
